<compile_context>
chip_gen: v7x
topology: tpu7x:2x2x1
jax: 0.10.0
libtpu: 0.0.40
codegen_flags: <defaults>
</compile_context>

<pallas_src>
import functools

import jax
import jax.numpy as jnp
from jax.experimental import pallas as pl
from jax.experimental.pallas import tpu as pltpu

LANE = 128
SUBLANE_F32 = 8               # f32 vreg sublane count (accumulator fold unit)
MAX_TILE_ROWS_MAP = 4096      # elementwise path: 3 arrays x 2 bufs x 2 MiB = 12 MiB (f32)
MAX_TILE_ROWS_REDUCE = 8192   # reduction path:   2 inputs x 2 bufs x 4 MiB = 16 MiB (f32)
VMEM_LIMIT_BYTES = 40 * 1024 * 1024   # <= ~40 MiB: safe headroom on v7x, raises v5e default


def _round_up(x, m):
    return ((x + m - 1) // m) * m


def _cdiv(a, b):
    return -(-a // b)


def _sublane_rows(dtype):
    """Minimal row-tile granularity for this dtype (8 f32 / 16 bf16 / 32 int8)."""
    itemsize = jnp.dtype(dtype).itemsize
    return SUBLANE_F32 * max(1, 4 // itemsize)


# ---------------------------------------------------------------------------
# Kernel 1: elementwise squared error  (is_tensor=True path)
# ---------------------------------------------------------------------------
def _sq_err_kernel(yt_ref, yp_ref, o_ref):
    # f32 compute keeps v5e (no bf16 VALU path) happy; cast back to output dtype.
    d = yt_ref[...].astype(jnp.float32) - yp_ref[...].astype(jnp.float32)
    o_ref[...] = (d * d).astype(o_ref.dtype)


# ---------------------------------------------------------------------------
# Kernel 2: squared-error sum reduction  (is_tensor=False path)
# The (8, 128) f32 output block is resident across the whole grid and acts as
# the accumulator; per-step work is purely elementwise vreg adds (VPU).
# ---------------------------------------------------------------------------
def _mse_sum_kernel(yt_ref, yp_ref, o_ref, *, rows_total, tile_rows):
    i = pl.program_id(0)

    @pl.when(i == 0)
    def _():
        o_ref[...] = jnp.zeros_like(o_ref)

    d = yt_ref[...].astype(jnp.float32) - yp_ref[...].astype(jnp.float32)
    sq = d * d

    if rows_total % tile_rows != 0:
        # Last grid tile is partial: rows past `rows_total` are garbage reads.
        # Mask them; for non-last steps the limit >= tile_rows so this is a no-op.
        row = jax.lax.broadcasted_iota(jnp.int32, sq.shape, 0)
        limit = rows_total - i * tile_rows
        sq = jnp.where(row < limit, sq, 0.0)

    # Fold the tile onto a single (8, 128) vreg: pure elementwise adds, no XLU.
    o_ref[...] += jnp.sum(
        sq.reshape(tile_rows // SUBLANE_F32, SUBLANE_F32, LANE), axis=0)


# ---------------------------------------------------------------------------
# Wrappers
# ---------------------------------------------------------------------------
def _to_slab(x, padded_rows):
    """Flatten to [padded_rows, 128]; zero-pad only the (small) ragged tail."""
    flat = x.reshape(-1)
    pad = padded_rows * LANE - flat.shape[0]
    if pad:
        flat = jnp.pad(flat, (0, pad))
    return flat.reshape(padded_rows, LANE)


def mse_loss(y_true, y_pred, is_tensor=False, max_tile_rows=None):
    assert y_true.shape == y_pred.shape, "MSELoss expects matching shapes"
    orig_shape = y_true.shape
    dtype = y_true.dtype
    itemsize = jnp.dtype(dtype).itemsize
    n = int(y_true.size)

    if n == 0:
        if is_tensor:
            return jnp.zeros(orig_shape, dtype=dtype)
        return jnp.array(jnp.nan, dtype=dtype)   # matches torch.mean on empty

    sub = _sublane_rows(dtype)
    rows = _cdiv(n, LANE)
    padded_rows = _round_up(rows, sub)           # minimal slab granularity only

    if is_tensor:
        cap = max_tile_rows if max_tile_rows is not None else MAX_TILE_ROWS_MAP
        tile_rows = min(_round_up(cap, sub), padded_rows)
        steps = _cdiv(padded_rows, tile_rows)
        yt = _to_slab(y_true, padded_rows)
        yp = _to_slab(y_pred, padded_rows)
        out = pl.pallas_call(
            _sq_err_kernel,
            out_shape=jax.ShapeDtypeStruct((padded_rows, LANE), dtype),
            grid_spec=pltpu.PrefetchScalarGridSpec(
                num_scalar_prefetch=0,
                grid=(steps,),
                in_specs=[
                    pl.BlockSpec((tile_rows, LANE), lambda i: (i, 0)),
                    pl.BlockSpec((tile_rows, LANE), lambda i: (i, 0)),
                ],
                out_specs=pl.BlockSpec((tile_rows, LANE), lambda i: (i, 0)),
            ),
            compiler_params=pltpu.CompilerParams(
                dimension_semantics=("parallel",),
                vmem_limit_bytes=VMEM_LIMIT_BYTES,
            ),
            cost_estimate=pl.CostEstimate(
                flops=2 * n, transcendentals=0,
                bytes_accessed=3 * n * itemsize),
        )(yt, yp)
        if padded_rows * LANE == n:              # common aligned case: no copies
            return out.reshape(orig_shape)
        return out.reshape(-1)[:n].reshape(orig_shape)

    # -------------------- reduction (scalar mean) path --------------------
    cap = max_tile_rows if max_tile_rows is not None else MAX_TILE_ROWS_REDUCE
    tile_rows = min(_round_up(cap, sub), padded_rows)
    steps = _cdiv(padded_rows, tile_rows)
    yt = _to_slab(y_true, padded_rows)
    yp = _to_slab(y_pred, padded_rows)

    kernel = functools.partial(_mse_sum_kernel,
                               rows_total=padded_rows, tile_rows=tile_rows)
    acc = pl.pallas_call(
        kernel,
        out_shape=jax.ShapeDtypeStruct((SUBLANE_F32, LANE), jnp.float32),
        grid_spec=pltpu.PrefetchScalarGridSpec(
            num_scalar_prefetch=0,
            grid=(steps,),
            in_specs=[
                pl.BlockSpec((tile_rows, LANE), lambda i: (i, 0)),
                pl.BlockSpec((tile_rows, LANE), lambda i: (i, 0)),
            ],
            out_specs=pl.BlockSpec((SUBLANE_F32, LANE), lambda i: (0, 0)),
        ),
        compiler_params=pltpu.CompilerParams(
            dimension_semantics=("arbitrary",),
            vmem_limit_bytes=VMEM_LIMIT_BYTES,
        ),
        cost_estimate=pl.CostEstimate(
            flops=3 * n, transcendentals=0,
            bytes_accessed=2 * n * itemsize),
    )(yt, yp)
    # Single cross-lane reduce + 1/N scale on the tiny (8, 128) result.
    return (jnp.sum(acc) * (1.0 / float(n))).astype(dtype)


if __name__ == "__main__":
    key = jax.random.PRNGKey(0)
    k1, k2, k3, k4 = jax.random.split(key, 4)

    # shapes consistent with a typical NCHW use of this loss
    y_true = jax.random.normal(k1, (2, 4, 16, 16), dtype=jnp.float32)
    y_pred = jax.random.normal(k2, (2, 4, 16, 16), dtype=jnp.float32)

    # is_tensor=False: scalar mean
    loss = jax.block_until_ready(mse_loss(y_true, y_pred, is_tensor=False))
    ref = jnp.mean((y_true - y_pred) ** 2)
    assert jnp.allclose(loss, ref, rtol=1e-5, atol=1e-6), (loss, ref)

    # is_tensor=True: elementwise squared error tensor
    t = jax.block_until_ready(mse_loss(y_true, y_pred, is_tensor=True))
    ref_t = (y_true - y_pred) ** 2
    assert t.shape == ref_t.shape
    assert jnp.allclose(t, ref_t, rtol=1e-5, atol=1e-6)

    # ragged shape (exercises the minimal-pad + slice-back path)
    a = jax.random.normal(k3, (3, 5, 7), dtype=jnp.float32)
    b = jax.random.normal(k4, (3, 5, 7), dtype=jnp.float32)
    loss2 = jax.block_until_ready(mse_loss(a, b, is_tensor=False))
    assert jnp.allclose(loss2, jnp.mean((a - b) ** 2), rtol=1e-5, atol=1e-6)
    t2 = jax.block_until_ready(mse_loss(a, b, is_tensor=True))
    assert t2.shape == a.shape
    assert jnp.allclose(t2, (a - b) ** 2, rtol=1e-5, atol=1e-6)

    # multi-step reduction with a ragged last tile (exercises in-kernel masking)
    c = jax.random.normal(k3, (3, 8, 128), dtype=jnp.float32)   # rows=24
    d = jax.random.normal(k4, (3, 8, 128), dtype=jnp.float32)
    loss3 = jax.block_until_ready(mse_loss(c, d, is_tensor=False, max_tile_rows=16))
    assert jnp.allclose(loss3, jnp.mean((c - d) ** 2), rtol=1e-5, atol=1e-6)

    # bf16 exercises the dtype-aware (16, 128) sublane tiling
    yb, pb = y_true.astype(jnp.bfloat16), y_pred.astype(jnp.bfloat16)
    lb = jax.block_until_ready(mse_loss(yb, pb, is_tensor=False))
    refb = jnp.mean((yb.astype(jnp.float32) - pb.astype(jnp.float32)) ** 2)
    assert jnp.allclose(lb.astype(jnp.float32), refb, rtol=2e-2, atol=2e-2)

    print("KERNEL_OK")
</pallas_src>

<mosaic_0001>
module attributes {stable_mosaic.version = 11 : i64} {
  func.func @_mse_sum_kernel(%arg0: i32, %arg1: memref<16x128xf32, #tpu.memory_space<vmem>>, %arg2: memref<16x128xf32, #tpu.memory_space<vmem>>, %arg3: memref<8x128xf32, #tpu.memory_space<vmem>>) attributes {dimension_semantics = [#tpu.dimension_semantics<arbitrary>], iteration_bounds = array<i64: 1>, scalar_prefetch = 0 : i64, scratch_operands = 0 : i64, tpu.core_type = #tpu.core_type<tc>, window_params = [{transform_indices = @transform_0, window_bounds = array<i64: 16, 128>}, {transform_indices = @transform_1, window_bounds = array<i64: 16, 128>}, {pipeline_mode = #tpu.pipeline_mode<synchronous>, transform_indices = @transform_2, window_bounds = array<i64: 8, 128>}]} {
    %c0_i32 = arith.constant 0 : i32
    %0 = arith.cmpi eq, %arg0, %c0_i32 : i32
    %1 = arith.extui %0 : i1 to i32
    %c0_i32_0 = arith.constant 0 : i32
    %2 = arith.cmpi ne, %1, %c0_i32_0 : i32
    scf.if %2 {
      %cst_8 = arith.constant 0.000000e+00 : f32
      %12 = vector.broadcast %cst_8 : f32 to vector<8x128xf32>
      %c0_9 = arith.constant 0 : index
      %c0_10 = arith.constant 0 : index
      %13 = vector.load %arg3[%c0_9, %c0_10] : memref<8x128xf32, #tpu.memory_space<vmem>>, vector<8x128xf32>
      tpu.vector_store %arg3[%c0_9, %c0_10], %12 {strides = array<i32>} : memref<8x128xf32, #tpu.memory_space<vmem>>, vector<8x128xf32>,
    } else {
    }
    %c0 = arith.constant 0 : index
    %c0_1 = arith.constant 0 : index
    %3 = vector.load %arg1[%c0, %c0_1] : memref<16x128xf32, #tpu.memory_space<vmem>>, vector<16x128xf32>
    %c0_2 = arith.constant 0 : index
    %c0_3 = arith.constant 0 : index
    %4 = vector.load %arg2[%c0_2, %c0_3] : memref<16x128xf32, #tpu.memory_space<vmem>>, vector<16x128xf32>
    %5 = arith.subf %3, %4 : vector<16x128xf32>
    %6 = arith.mulf %5, %5 : vector<16x128xf32>
    %c0_4 = arith.constant 0 : index
    %c0_5 = arith.constant 0 : index
    %7 = vector.load %arg3[%c0_4, %c0_5] : memref<8x128xf32, #tpu.memory_space<vmem>>, vector<8x128xf32>
    %8 = vector.shape_cast %6 : vector<16x128xf32> to vector<2x8x128xf32>
    %cst = arith.constant dense<0.000000e+00> : vector<8x128xf32>
    %9 = vector.multi_reduction <add>, %8, %cst [0] : vector<2x8x128xf32> to vector<8x128xf32>
    %10 = arith.addf %7, %9 : vector<8x128xf32>
    %c0_6 = arith.constant 0 : index
    %c0_7 = arith.constant 0 : index
    %11 = vector.load %arg3[%c0_6, %c0_7] : memref<8x128xf32, #tpu.memory_space<vmem>>, vector<8x128xf32>
    tpu.vector_store %arg3[%c0_6, %c0_7], %10 {strides = array<i32>} : memref<8x128xf32, #tpu.memory_space<vmem>>, vector<8x128xf32>,
    return
  }
  func.func @transform_0(%arg0: i32) -> (i32, i32) {
    %c0_i32 = arith.constant 0 : i32
    %c0_i32_0 = arith.constant 0 : i32
    return %arg0, %c0_i32 : i32, i32
  }
  func.func @transform_1(%arg0: i32) -> (i32, i32) {
    %c0_i32 = arith.constant 0 : i32
    %c0_i32_0 = arith.constant 0 : i32
    return %arg0, %c0_i32 : i32, i32
  }
  func.func @transform_2(%arg0: i32) -> (i32, i32) {
    %c0_i32 = arith.constant 0 : i32
    %c0_i32_0 = arith.constant 0 : i32
    %c0_i32_1 = arith.constant 0 : i32
    return %c0_i32, %c0_i32_0 : i32, i32
  }
}

</mosaic_0001>

<llo_original>
// kernel: tpu_custom_call.1
$region0: #{tpu_custom_call.1}
  #allocation0 [shape = 'u32[]', space=smem, size = 0x4, offset = 0x4, fixed_abs, tag = 'smem constant byte address 0x4 - core index']
  #allocation1 [shape = 'u32[144,128]{1,0:T(1,128)}', space=vmem, size = 0x12000, scoped, tag = 'internal scratch']
  %s0 = inlined_call_operand.hbm [shape: f32[16,128], index: 0, kind: input, shape index: {}]
  %s1 = inlined_call_operand.hbm [shape: f32[16,128], index: 1, kind: input, shape index: {}]
  %s2 = inlined_call_operand.hbm [shape: f32[8,128], index: 2, kind: output, shape index: {}]
  %s3 = sld [smem:[#allocation0]]
  $region30: #{tpu_custom_call.1} parent=0
    _
  %s5 = ssub.s32 1, %s3
  %s6 = scalar_select 0, %s5, %s3
  $region1: #{tpu_custom_call.1} parent=0
    #allocation2 [shape = 'u8[8192]{0}', space=vmem, size = 0x2000, scoped, tag = 'input window, operand 0, single buffered']
    #allocation3 [shape = 's32[1]{0}', space=sflag, size = 0x4, scoped, tag = 'scoped memory for tpu_custom_call.1']
    #allocation4 [shape = 's32[1]{0}', space=sflag, size = 0x4, scoped, tag = 'scoped memory for tpu_custom_call.1']
    #allocation5 [shape = 'u8[8192]{0}', space=vmem, size = 0x2000, scoped, tag = 'input window, operand 1, single buffered']
    #allocation6 [shape = 's32[1]{0}', space=sflag, size = 0x4, scoped, tag = 'scoped memory for tpu_custom_call.1']
    #allocation7 [shape = 'u8[4096]{0}', space=vmem, size = 0x1000, scoped, tag = 'output window, operand 0, single buffered']
    %7 = vsyncpa [#allocation3], 0
    %8 = vsyncpa [#allocation6], 0
    %9 = vsyncpa [#allocation4], 0
    // Predicated region
    $region2: #{tpu_custom_call.1} parent=1 // pred_check
      _
    $region3: #{tpu_custom_call.1} parent=1 // pred_check_branch
      %11 = sbr.rel (0) target = $region5
    $region4: #{tpu_custom_call.1} parent=1 // pred_region
      %s13 = ssub.s32 256, 256
      %14 = vsyncadd [#allocation3], %s13
      %s15 = sshll.u32 [#allocation2], 4
      %s16 = int_to_ptr.vmem [resolvable:$true] %s15
      %21 = dma.hbm_to_vmem [thread:$0]  %s0, 256, %s16, [#allocation3], 128, 128, 8
    $region5: #{tpu_custom_call.1} parent=1 // pred_fallthru
      _
    // Predicated region
    $region6: #{tpu_custom_call.1} parent=1 // pred_check
      _
    $region7: #{tpu_custom_call.1} parent=1 // pred_check_branch
      %23 = sbr.rel (0) target = $region9
    $region8: #{tpu_custom_call.1} parent=1 // pred_region
      %s25 = ssub.s32 256, 256
      %26 = vsyncadd [#allocation6], %s25
      %s27 = sshll.u32 [#allocation5], 4
      %s28 = int_to_ptr.vmem [resolvable:$true] %s27
      %33 = dma.hbm_to_vmem [thread:$0]  %s1, 256, %s28, [#allocation6], 128, 128, 8
    $region9: #{tpu_custom_call.1} parent=1 // pred_fallthru
      _
    // Predicated region
    $region10: #{tpu_custom_call.1} parent=1 // pred_check
      _
    $region11: #{tpu_custom_call.1} parent=1 // pred_check_branch
      %35 = sbr.rel (0) target = $region13
    $region12: #{tpu_custom_call.1} parent=1 // pred_region
      %36 = dma.done [#allocation3], 256
    $region13: #{tpu_custom_call.1} parent=1 // pred_fallthru
      _
    // Predicated region
    $region14: #{tpu_custom_call.1} parent=1 // pred_check
      _
    $region15: #{tpu_custom_call.1} parent=1 // pred_check_branch
      %38 = sbr.rel (0) target = $region17
    $region16: #{tpu_custom_call.1} parent=1 // pred_region
      %39 = dma.done [#allocation6], 256
    $region17: #{tpu_custom_call.1} parent=1 // pred_fallthru
      _
    %p40 = scmp.eq.s32.totalorder 0, 0
    // Predicated region
    $region18: #{tpu_custom_call.1} parent=1 // pred_check
      %p41 = pneg %p40
    $region19: #{tpu_custom_call.1} parent=1 // pred_check_branch
      %43 = sbr.rel (%p41) target = $region21
    $region20: #{tpu_custom_call.1} parent=1 // pred_region
      %44 = vst [vmem:[#allocation7] sm:$0xff] 0.0
    $region21: #{tpu_custom_call.1} parent=1 // pred_fallthru
      _
    %v45 = vld [vmem:[#allocation2] sm:$0xff]
    %v46 = vld [vmem:[#allocation2 + $0x8] sm:$0xff]
    %v47 = vld [vmem:[#allocation5] sm:$0xff]
    %v48 = vld [vmem:[#allocation5 + $0x8] sm:$0xff]
    %v49 = vsub.f32 %v45, %v47
    %v50 = vsub.f32 %v46, %v48
    %v51 = vmul.f32 %v49, %v49
    %v52 = vmul.f32 %v50, %v50
    %v53 = vld [vmem:[#allocation7] sm:$0xff]
    %v54 = vadd.f32 %v51, %v52
    %v55 = vadd.f32 %v53, %v54
    %56 = vst [vmem:[#allocation7] sm:$0xff] %v55
    // Predicated region
    $region22: #{tpu_custom_call.1} parent=1 // pred_check
      _
    $region23: #{tpu_custom_call.1} parent=1 // pred_check_branch
      %58 = sbr.rel (0) target = $region25
    $region24: #{tpu_custom_call.1} parent=1 // pred_region
      %s60 = ssub.s32 128, 128
      %61 = vsyncadd [#allocation4], %s60
      %s63 = sshll.u32 [#allocation7], 4
      %s64 = int_to_ptr.vmem [resolvable:$true] %s63
      %66 = dma.vmem_to_hbm [thread:$0]  %s64, 128, %s2, [#allocation4]
    $region25: #{tpu_custom_call.1} parent=1 // pred_fallthru
      _
    // Predicated region
    $region26: #{tpu_custom_call.1} parent=1 // pred_check
      _
    $region27: #{tpu_custom_call.1} parent=1 // pred_check_branch
      %68 = sbr.rel (0) target = $region29
    $region28: #{tpu_custom_call.1} parent=1 // pred_region
      %69 = dma.done [#allocation4], 128
    $region29: #{tpu_custom_call.1} parent=1 // pred_fallthru
      _
    %70 = vsyncpa [#allocation3], 1
    %71 = vsyncpa [#allocation6], 1
    %72 = vsyncpa [#allocation4], 1

</llo_original>
